<compile_context>
chip_gen: v7x
topology: tpu7x:2x2x1
jax: 0.10.0
libtpu: 0.0.40
codegen_flags: <defaults>
</compile_context>

<pallas_src>
import functools

import jax
import jax.numpy as jnp
from jax.experimental import pallas as pl
from jax.experimental.pallas import tpu as pltpu


def _reservoir2_kernel(x_ref, w_ref, b_ref, o_ref, *, neg_slope):
    # x_ref: (tm, S)   w_ref: (S, tn)   b_ref: (1, tn)   o_ref: (tm, tn)
    z = jnp.dot(x_ref[...], w_ref[...], preferred_element_type=jnp.float32)
    z = z + b_ref[...]
    # LeakyReLU with negative_slope = neg_slope
    o_ref[...] = jnp.where(z >= 0, z, neg_slope * z).astype(o_ref.dtype)


def _round_up(x, m):
    return ((x + m - 1) // m) * m


def reservoir2_forward(x, w_t, b, *, factor=1.0, neg_slope=0.5,
                       tile_b=256, tile_h=512):
    """Reservoir2 forward: LeakyReLU_{neg_slope}((x * factor) @ w_t + b).

    x:   (B, S) float32
    w_t: (S, H) float32  (transposed torch Linear weight, i.e. W.T)
    b:   (H,)   float32
    """
    B, S = x.shape
    S2, H = w_t.shape
    assert S == S2, "state_size mismatch"

    # Fold the input scale into the weight once, outside the kernel.
    w_scaled = w_t * jnp.asarray(factor, w_t.dtype)

    # Pad to sublane/lane-dense shapes: batch -> x8, hidden -> x128.
    B_pad = _round_up(B, 8)
    H_pad = _round_up(H, 128)

    # Tile sizes: whole padded problem as one block when small; MXU-friendly otherwise.
    tm = min(B_pad, _round_up(tile_b, 8))
    tn = min(H_pad, _round_up(tile_h, 128))
    B_pad = _round_up(B_pad, tm)
    H_pad = _round_up(H_pad, tn)

    x_p = x if B_pad == B else jnp.pad(x, ((0, B_pad - B), (0, 0)))
    w_p = w_scaled if H_pad == H else jnp.pad(w_scaled, ((0, 0), (0, H_pad - H)))
    b_p = b if H_pad == H else jnp.pad(b, (0, H_pad - H))
    b2d = b_p.reshape(1, H_pad)

    kernel = functools.partial(_reservoir2_kernel, neg_slope=neg_slope)

    grid = (B_pad // tm, H_pad // tn)
    out = pl.pallas_call(
        kernel,
        out_shape=jax.ShapeDtypeStruct((B_pad, H_pad), jnp.float32),
        grid_spec=pltpu.PrefetchScalarGridSpec(
            num_scalar_prefetch=0,
            grid=grid,
            in_specs=[
                pl.BlockSpec((tm, S), lambda i, j: (i, 0)),   # x row-tile (full K)
                pl.BlockSpec((S, tn), lambda i, j: (0, j)),   # weight column-tile (full K)
                pl.BlockSpec((1, tn), lambda i, j: (0, j)),   # bias row
            ],
            out_specs=pl.BlockSpec((tm, tn), lambda i, j: (i, j)),
        ),
        compiler_params=pltpu.CompilerParams(
            dimension_semantics=("parallel", "parallel")),
    )(x_p, w_p, b2d)

    if B_pad != B or H_pad != H:
        out = out[:B, :H]
    return out


def reservoir2_reference(x, w_t, b, *, factor=1.0, neg_slope=0.5):
    z = (x * factor) @ w_t + b
    return jnp.where(z >= 0, z, neg_slope * z)


if __name__ == "__main__":
    # Module hyperparameters (shapes implied by Reservoir2.__init__).
    state_size = 4
    hidden_size = 32
    batch = 16
    factors = (1.7,)          # factors[0] scales the input
    neg_slope = 0.5           # LeakyReLU(0.5)

    key = jax.random.PRNGKey(0)
    kx, kw, kb = jax.random.split(key, 3)

    # Deterministic synthetic init: Linear weight ~ N(0,1), bias ~ N(0,1)
    # (matches init_weights with mean=0, std=1).
    W = jax.random.normal(kw, (hidden_size, state_size), dtype=jnp.float32)
    b = jax.random.normal(kb, (hidden_size,), dtype=jnp.float32)
    x = jax.random.normal(kx, (batch, state_size), dtype=jnp.float32)

    w_t = W.T  # (state_size, hidden_size) for x @ W.T

    out = reservoir2_forward(x, w_t, b, factor=factors[0], neg_slope=neg_slope)
    out = jax.block_until_ready(out)
    ref = reservoir2_reference(x, w_t, b, factor=factors[0], neg_slope=neg_slope)
    assert out.shape == (batch, hidden_size)
    assert jnp.allclose(out, ref, atol=1e-5, rtol=1e-5), "mismatch vs reference"

    # Second check: ragged batch / hidden (exercises padding + slicing path).
    kx2, kw2, kb2 = jax.random.split(jax.random.PRNGKey(1), 3)
    B2, S2_, H2 = 7, 4, 50
    W2 = jax.random.normal(kw2, (H2, S2_), dtype=jnp.float32)
    b2 = jax.random.normal(kb2, (H2,), dtype=jnp.float32)
    x2 = jax.random.normal(kx2, (B2, S2_), dtype=jnp.float32)
    out2 = jax.block_until_ready(
        reservoir2_forward(x2, W2.T, b2, factor=factors[0], neg_slope=neg_slope))
    ref2 = reservoir2_reference(x2, W2.T, b2, factor=factors[0], neg_slope=neg_slope)
    assert out2.shape == (B2, H2)
    assert jnp.allclose(out2, ref2, atol=1e-5, rtol=1e-5), "mismatch vs reference (ragged)"

    print("KERNEL_OK")
</pallas_src>

<mosaic_0001>
module attributes {stable_mosaic.version = 11 : i64} {
  func.func @_reservoir2_kernel(%arg0: i32, %arg1: i32, %arg2: memref<16x4xf32, #tpu.memory_space<vmem>>, %arg3: memref<4x128xf32, #tpu.memory_space<vmem>>, %arg4: memref<1x128xf32, #tpu.memory_space<vmem>>, %arg5: memref<16x128xf32, #tpu.memory_space<vmem>>) attributes {dimension_semantics = [#tpu.dimension_semantics<parallel>, #tpu.dimension_semantics<parallel>], iteration_bounds = array<i64: 1, 1>, scalar_prefetch = 0 : i64, scratch_operands = 0 : i64, tpu.core_type = #tpu.core_type<tc>, window_params = [{transform_indices = @transform_0, window_bounds = array<i64: 16, 4>}, {transform_indices = @transform_1, window_bounds = array<i64: 4, 128>}, {transform_indices = @transform_2, window_bounds = array<i64: 1, 128>}, {transform_indices = @transform_3, window_bounds = array<i64: 16, 128>}]} {
    %c0 = arith.constant 0 : index
    %c0_0 = arith.constant 0 : index
    %0 = vector.load %arg2[%c0, %c0_0] : memref<16x4xf32, #tpu.memory_space<vmem>>, vector<16x4xf32>
    %c0_1 = arith.constant 0 : index
    %c0_2 = arith.constant 0 : index
    %1 = vector.load %arg3[%c0_1, %c0_2] : memref<4x128xf32, #tpu.memory_space<vmem>>, vector<4x128xf32>
    %cst = arith.constant dense<0.000000e+00> : vector<16x128xf32>
    %2 = tpu.matmul %0, %1, %cst {dimension_numbers = #tpu.dot_dimension_numbers<[1], [0], [0], [1], [0, 0, 1, 1], [], []>} : vector<16x4xf32>, vector<4x128xf32>, vector<16x128xf32> -> vector<16x128xf32>
    %c0_3 = arith.constant 0 : index
    %c0_4 = arith.constant 0 : index
    %3 = vector.load %arg4[%c0_3, %c0_4] : memref<1x128xf32, #tpu.memory_space<vmem>>, vector<1x128xf32>
    %4 = vector.broadcast %3 : vector<1x128xf32> to vector<16x128xf32>
    %5 = arith.addf %2, %4 : vector<16x128xf32>
    %cst_5 = arith.constant 0.000000e+00 : f32
    %6 = vector.broadcast %cst_5 : f32 to vector<16x128xf32>
    %7 = arith.cmpf oge, %5, %6 : vector<16x128xf32>
    %cst_6 = arith.constant 5.000000e-01 : f32
    %8 = vector.broadcast %cst_6 : f32 to vector<16x128xf32>
    %9 = arith.mulf %8, %5 : vector<16x128xf32>
    %10 = arith.select %7, %5, %9 : vector<16x128xi1>, vector<16x128xf32>
    %c0_7 = arith.constant 0 : index
    %c0_8 = arith.constant 0 : index
    %11 = vector.load %arg5[%c0_7, %c0_8] : memref<16x128xf32, #tpu.memory_space<vmem>>, vector<16x128xf32>
    tpu.vector_store %arg5[%c0_7, %c0_8], %10 {strides = array<i32>} : memref<16x128xf32, #tpu.memory_space<vmem>>, vector<16x128xf32>,
    return
  }
  func.func @transform_0(%arg0: i32, %arg1: i32) -> (i32, i32) {
    %c0_i32 = arith.constant 0 : i32
    %c0_i32_0 = arith.constant 0 : i32
    return %arg0, %c0_i32 : i32, i32
  }
  func.func @transform_1(%arg0: i32, %arg1: i32) -> (i32, i32) {
    %c0_i32 = arith.constant 0 : i32
    %c0_i32_0 = arith.constant 0 : i32
    return %c0_i32, %arg1 : i32, i32
  }
  func.func @transform_2(%arg0: i32, %arg1: i32) -> (i32, i32) {
    %c0_i32 = arith.constant 0 : i32
    %c0_i32_0 = arith.constant 0 : i32
    return %c0_i32, %arg1 : i32, i32
  }
  func.func @transform_3(%arg0: i32, %arg1: i32) -> (i32, i32) {
    %c0_i32 = arith.constant 0 : i32
    return %arg0, %arg1 : i32, i32
  }
}

</mosaic_0001>

<llo_original>
// kernel: tpu_custom_call.1
$region0: #{tpu_custom_call.1}
  #allocation0 [shape = 'u32[]', space=smem, size = 0x4, offset = 0x4, fixed_abs, tag = 'smem constant byte address 0x4 - core index']
  #allocation1 [shape = 'u32[144,128]{1,0:T(1,128)}', space=vmem, size = 0x12000, scoped, tag = 'internal scratch']
  %s0 = inlined_call_operand.vmem [shape: f32[16,4], index: 0, kind: input, shape index: {}]
  %s1 = inlined_call_operand.vmem [shape: f32[4,128], index: 1, kind: input, shape index: {}]
  %s2 = inlined_call_operand.vmem [shape: f32[1,128], index: 2, kind: input, shape index: {}]
  %s3 = inlined_call_operand.hbm [shape: f32[16,128], index: 3, kind: output, shape index: {}]
  %s4 = sld [smem:[#allocation0]]
  $region22: #{tpu_custom_call.1} parent=0
    _
  %s6 = ssub.s32 1, %s4
  %s7 = scalar_select 0, %s6, %s4
  $region1: #{tpu_custom_call.1} parent=0
    #allocation2 [shape = 'u8[8192]{0}', space=vmem, size = 0x2000, scoped, tag = 'output window, operand 0, single buffered']
    #allocation3 [shape = 's32[1]{0}', space=sflag, size = 0x4, scoped, tag = 'scoped memory for tpu_custom_call.1']
    %8 = vsyncpa [#allocation3], 0
    // Predicated region
    $region2: #{tpu_custom_call.1} parent=1 // pred_check
      _
    $region3: #{tpu_custom_call.1} parent=1 // pred_check_branch
      %10 = sbr.rel (0) target = $region5
    $region4: #{tpu_custom_call.1} parent=1 // pred_region
      _
    $region5: #{tpu_custom_call.1} parent=1 // pred_fallthru
      _
    // Predicated region
    $region6: #{tpu_custom_call.1} parent=1 // pred_check
      _
    $region7: #{tpu_custom_call.1} parent=1 // pred_check_branch
      %12 = sbr.rel (0) target = $region9
    $region8: #{tpu_custom_call.1} parent=1 // pred_region
      _
    $region9: #{tpu_custom_call.1} parent=1 // pred_fallthru
      _
    // Predicated region
    $region10: #{tpu_custom_call.1} parent=1 // pred_check
      _
    $region11: #{tpu_custom_call.1} parent=1 // pred_check_branch
      %14 = sbr.rel (0) target = $region13
    $region12: #{tpu_custom_call.1} parent=1 // pred_region
      _
    $region13: #{tpu_custom_call.1} parent=1 // pred_fallthru
      _
    %v15 = vld [vmem:[%s0] sm:$0xff]
    %v16 = vld [vmem:[%s0 + $0x8] sm:$0xff]
    %v17 = vld [vmem:[%s1] sm:$0xf]
    %v18 = vld [vmem:[%s2] sm:$0x1]
    %v20 = vlaneseq
    %v21 = vshrl.u32 %v20, 7
    %v22 = vsub.s32 0, %v21
    %v23 = vrot.slane %v18, %v22
    %vm25 = vcmask 31744
    %v27 = vsel %vm25, %v15, 0
    %v30 = vsel %vm25, %v16, 0
    %vm32 = vcmask 1043456
    %v34 = vsel %vm32, %v17, 0
    %36 = vmatprep.subr.mxu0 0.0
    %37 = vmatpush1.msra.mxu0 %v34
    %38 = vmatprep.subr.mxu0 0.0
    %39 = vmatpush1.msra.mxu0 0.0
    %40 = vmatprep.subr.mxu0 0.0
    %41 = vmatpush1.msra.mxu0 0.0
    %42 = vmatprep.subr.mxu0 0.0
    %43 = vmatpush1.msra.mxu0 0.0
    %44 = vmatprep.subr.mxu0 0.0
    %45 = vmatpush1.msra.mxu0 0.0
    %46 = vmatprep.subr.mxu0 0.0
    %47 = vmatpush1.msra.mxu0 0.0
    %48 = vmatprep.subr.mxu0 0.0
    %49 = vmatpush1.msra.mxu0 0.0
    %50 = vmatprep.subr.mxu0 0.0
    %51 = vmatpush1.msra.mxu0 0.0
    %52 = vmatprep.subr.mxu0 0.0
    %53 = vmatpush1.msra.mxu0 0.0
    %54 = vmatprep.subr.mxu0 0.0
    %55 = vmatpush1.msra.mxu0 0.0
    %56 = vmatprep.subr.mxu0 0.0
    %57 = vmatpush1.msra.mxu0 0.0
    %58 = vmatprep.subr.mxu0 0.0
    %59 = vmatpush1.msra.mxu0 0.0
    %60 = vmatprep.subr.mxu0 0.0
    %61 = vmatpush1.msra.mxu0 0.0
    %62 = vmatprep.subr.mxu0 0.0
    %63 = vmatpush1.msra.mxu0 0.0
    %64 = vmatprep.subr.mxu0 0.0
    %65 = vmatpush1.msra.mxu0 0.0
    %66 = vmatprep.subr.mxu0 0.0
    %67 = vmatpush1.msra.mxu0 0.0
    %68 = vmatprep.subr.mxu0 0.0
    %69 = vmatpush1.msra.mxu0 0.0
    %70 = vmatprep.subr.mxu0 0.0
    %71 = vmatpush1.msra.mxu0 0.0
    %72 = vmatprep.subr.mxu0 0.0
    %73 = vmatpush1.msra.mxu0 0.0
    %74 = vmatprep.subr.mxu0 0.0
    %75 = vmatpush1.msra.mxu0 0.0
    %76 = vmatprep.subr.mxu0 0.0
    %77 = vmatpush1.msra.mxu0 0.0
    %78 = vmatprep.subr.mxu0 0.0
    %79 = vmatpush1.msra.mxu0 0.0
    %80 = vmatprep.subr.mxu0 0.0
    %81 = vmatpush1.msra.mxu0 0.0
    %82 = vmatprep.subr.mxu0 0.0
    %83 = vmatpush1.msra.mxu0 0.0
    %84 = vmatprep.subr.mxu0 0.0
    %85 = vmatpush1.msra.mxu0 0.0
    %86 = vmatprep.subr.mxu0 0.0
    %87 = vmatpush1.msra.mxu0 0.0
    %88 = vmatprep.subr.mxu0 0.0
    %89 = vmatpush1.msra.mxu0 0.0
    %90 = vmatprep.subr.mxu0 0.0
    %91 = vmatpush1.msra.mxu0 0.0
    %92 = vmatprep.subr.mxu0 0.0
    %93 = vmatpush1.msra.mxu0 0.0
    %94 = vmatprep.subr.mxu0 0.0
    %95 = vmatpush1.msra.mxu0 0.0
    %96 = vmatprep.subr.mxu0 0.0
    %97 = vmatpush1.msra.mxu0 0.0
    %98 = vmatprep.subr.mxu0 0.0
    %99 = vmatpush1.msra.mxu0 0.0
    %100 = vmatprep.mubr.f32.mxu0 0.0
    %101 = vmatmul.mubr.f32.gmra.mrb[0].mxu0 %v27
    %v102 = vpop.f32.mrb[0].mxu0
    %v103 = vadd.f32 %v23, %v102
    %v104 = vpop.f32.mrb[0].mxu0
    %105 = vmatprep.mubr.f32.mxu0 0.0
    %106 = vmatmul.mubr.f32.gmra.mrb[0].mxu0 %v30
    %v107 = vpop.f32.mrb[0].mxu0
    %v108 = vadd.f32 %v23, %v107
    %v109 = vpop.f32.mrb[0].mxu0
    %110 = vdwg.mxu0
    %vm111 = vcmp.ge.f32.partialorder %v103, 0.0
    %vm112 = vcmp.ge.f32.partialorder %v108, 0.0
    %v113 = vmul.f32 %v103, 0.5
    %v114 = vmul.f32 %v108, 0.5
    %v115 = vsel %vm111, %v103, %v113
    %v116 = vsel %vm112, %v108, %v114
    %117 = vst [vmem:[#allocation2] sm:$0xff] %v115
    %118 = vst [vmem:[#allocation2 + $0x8] sm:$0xff] %v116
    // Predicated region
    $region14: #{tpu_custom_call.1} parent=1 // pred_check
      _
    $region15: #{tpu_custom_call.1} parent=1 // pred_check_branch
      %120 = sbr.rel (0) target = $region17
    $region16: #{tpu_custom_call.1} parent=1 // pred_region
      %s122 = ssub.s32 256, 256
      %123 = vsyncadd [#allocation3], %s122
      %s124 = sshll.u32 [#allocation2], 4
      %s125 = int_to_ptr.vmem [resolvable:$true] %s124
      %130 = dma.vmem_to_hbm [thread:$0]  %s125, 256, %s3, [#allocation3], 128, 128, 8
    $region17: #{tpu_custom_call.1} parent=1 // pred_fallthru
      _
    // Predicated region
    $region18: #{tpu_custom_call.1} parent=1 // pred_check
      _
    $region19: #{tpu_custom_call.1} parent=1 // pred_check_branch
      %132 = sbr.rel (0) target = $region21
    $region20: #{tpu_custom_call.1} parent=1 // pred_region
      %133 = dma.done [#allocation3], 256
    $region21: #{tpu_custom_call.1} parent=1 // pred_fallthru
      _
    %134 = vsyncpa [#allocation3], 1

</llo_original>
